<compile_context>
chip_gen: v7x
topology: tpu7x:2x2x1
jax: 0.10.0
libtpu: 0.0.40
codegen_flags: <defaults>
</compile_context>

<pallas_src>
import jax
import jax.numpy as jnp
from jax.experimental import pallas as pl
from jax.experimental.pallas import tpu as pltpu


def _adapter_kernel(x_ref, w1_ref, b1_ref, w2_ref, b2_ref, o_ref):
    # x_ref: (1, C, THW)   w1_ref/w2_ref: (C, C)   b1_ref/b2_ref: (C, 1) f32
    # o_ref: (1, C, THW)
    cdtype = w1_ref.dtype                       # compute dtype (f32 or bf16)
    x = x_ref[0].astype(cdtype)                 # (C, THW)
    b1 = b1_ref[...]                            # (C, 1), broadcasts along lanes
    b2 = b2_ref[...]

    h = jnp.dot(w1_ref[...], x, preferred_element_type=jnp.float32) + b1
    h = jnp.maximum(h, 0.0)                     # ReLU
    y = jnp.dot(w2_ref[...], h.astype(cdtype),
                preferred_element_type=jnp.float32) + b2
    o_ref[0] = y.astype(o_ref.dtype)


def _round_up(x, m):
    return ((x + m - 1) // m) * m


def adapter_forward(x_nchw, w1, b1, w2, b2, *, use_bf16=False,
                    hw_block_budget_bytes=4 * 1024 * 1024):
    """x_nchw: (N, C, H, W); w1, w2: (C_out, C_in) from (C_out, C_in, 1, 1);
    b1, b2: (C,).  Returns (N, C, H, W)."""
    N, C, H, W = x_nchw.shape
    HW = H * W

    # Free view: NCHW -> (N, C, H*W).  No data movement.
    x3 = x_nchw.reshape(N, C, HW)

    # Pick the HW tile: as large as the per-block VMEM budget allows, rounded
    # to the 128-lane granule; ragged tails handled by Pallas block padding.
    itemsize = jnp.dtype(x3.dtype).itemsize
    thw_cap = max(128, (hw_block_budget_bytes // (C * itemsize)) // 128 * 128)
    thw = min(_round_up(HW, 128), thw_cap)
    num_hw = pl.cdiv(HW, thw)

    # Optionally carry matmul operands in bf16 (f32 accumulation in-kernel).
    w_dtype = jnp.bfloat16 if use_bf16 else w1.dtype
    w1k = w1.astype(w_dtype)
    w2k = w2.astype(w_dtype)
    b1c = b1.reshape(C, 1).astype(jnp.float32)
    b2c = b2.reshape(C, 1).astype(jnp.float32)

    # Explicit VMEM budget: in/out blocks double-buffered + resident weights,
    # plus headroom; capped so it is safe on v7x (64 MiB physical VMEM per TC).
    blk_bytes = C * thw * itemsize
    w_bytes = 2 * C * C * jnp.dtype(w_dtype).itemsize
    vmem_limit = int(min(48 * 2**20,
                         2 * 2 * blk_bytes + 2 * w_bytes + 2 * 2**20))

    out3 = pl.pallas_call(
        _adapter_kernel,
        out_shape=jax.ShapeDtypeStruct((N, C, HW), x3.dtype),
        grid_spec=pltpu.PrefetchScalarGridSpec(
            num_scalar_prefetch=0,
            grid=(N, num_hw),
            in_specs=[
                pl.BlockSpec((1, C, thw), lambda n, j: (n, 0, j)),  # x tile
                pl.BlockSpec((C, C), lambda n, j: (0, 0)),          # W1 (resident)
                pl.BlockSpec((C, 1), lambda n, j: (0, 0)),          # b1
                pl.BlockSpec((C, C), lambda n, j: (0, 0)),          # W2 (resident)
                pl.BlockSpec((C, 1), lambda n, j: (0, 0)),          # b2
            ],
            out_specs=pl.BlockSpec((1, C, thw), lambda n, j: (n, 0, j)),
        ),
        compiler_params=pltpu.CompilerParams(
            dimension_semantics=("parallel", "parallel"),
            vmem_limit_bytes=vmem_limit),
    )(x3, w1k, b1c, w2k, b2c)

    return out3.reshape(N, C, H, W)


def _reference_forward(x_nchw, w1, b1, w2, b2):
    # Pure-JAX reference for the 1x1-conv / ReLU / 1x1-conv stack (stays NCHW).
    N, C, H, W = x_nchw.shape
    xf = x_nchw.reshape(N, C, H * W)
    h = jnp.maximum(jnp.einsum('oc,ncl->nol', w1, xf) + b1[None, :, None], 0.0)
    y = jnp.einsum('oc,ncl->nol', w2, h) + b2[None, :, None]
    return y.reshape(N, C, H, W)


if __name__ == "__main__":
    channel = 128            # module default
    N, H, W = 2, 16, 16      # small spatial input consistent with a Conv2d forward

    key = jax.random.PRNGKey(0)
    kx, kw1, kb1, kw2, kb2 = jax.random.split(key, 5)

    x = jax.random.normal(kx, (N, channel, H, W), dtype=jnp.float32)

    # Parameter shapes from nn.Conv2d(C, C, 1): weight (C, C, 1, 1) -> (C, C),
    # bias (C,).  Deterministic uniform init within PyTorch's default bound.
    bound = 1.0 / (channel ** 0.5)
    w1 = jax.random.uniform(kw1, (channel, channel), jnp.float32, -bound, bound)
    b1 = jax.random.uniform(kb1, (channel,), jnp.float32, -bound, bound)
    w2 = jax.random.uniform(kw2, (channel, channel), jnp.float32, -bound, bound)
    b2 = jax.random.uniform(kb2, (channel,), jnp.float32, -bound, bound)

    out = adapter_forward(x, w1, b1, w2, b2)
    out = jax.block_until_ready(out)

    ref = _reference_forward(x, w1, b1, w2, b2)
    assert out.shape == (N, channel, H, W)
    assert jnp.allclose(out, ref, atol=1e-4, rtol=1e-4), "mismatch vs reference"

    print("KERNEL_OK")
</pallas_src>

<mosaic_0001>
module attributes {stable_mosaic.version = 11 : i64} {
  func.func @_adapter_kernel(%arg0: i32, %arg1: i32, %arg2: memref<1x128x256xf32, #tpu.memory_space<vmem>>, %arg3: memref<128x128xf32, #tpu.memory_space<vmem>>, %arg4: memref<128x1xf32, #tpu.memory_space<vmem>>, %arg5: memref<128x128xf32, #tpu.memory_space<vmem>>, %arg6: memref<128x1xf32, #tpu.memory_space<vmem>>, %arg7: memref<1x128x256xf32, #tpu.memory_space<vmem>>) attributes {dimension_semantics = [#tpu.dimension_semantics<parallel>, #tpu.dimension_semantics<parallel>], iteration_bounds = array<i64: 2, 1>, scalar_prefetch = 0 : i64, scratch_operands = 0 : i64, tpu.core_type = #tpu.core_type<tc>, window_params = [{transform_indices = @transform_0, window_bounds = array<i64: 1, 128, 256>}, {pipeline_mode = #tpu.pipeline_mode<synchronous>, transform_indices = @transform_1, window_bounds = array<i64: 128, 128>}, {pipeline_mode = #tpu.pipeline_mode<synchronous>, transform_indices = @transform_2, window_bounds = array<i64: 128, 1>}, {pipeline_mode = #tpu.pipeline_mode<synchronous>, transform_indices = @transform_3, window_bounds = array<i64: 128, 128>}, {pipeline_mode = #tpu.pipeline_mode<synchronous>, transform_indices = @transform_4, window_bounds = array<i64: 128, 1>}, {transform_indices = @transform_5, window_bounds = array<i64: 1, 128, 256>}]} {
    %c0 = arith.constant 0 : index
    %c0_0 = arith.constant 0 : index
    %c0_1 = arith.constant 0 : index
    %0 = vector.load %arg2[%c0, %c0_0, %c0_1] : memref<1x128x256xf32, #tpu.memory_space<vmem>>, vector<1x128x256xf32>
    %1 = vector.shape_cast %0 : vector<1x128x256xf32> to vector<128x256xf32>
    %c0_2 = arith.constant 0 : index
    %c0_3 = arith.constant 0 : index
    %2 = vector.load %arg4[%c0_2, %c0_3] : memref<128x1xf32, #tpu.memory_space<vmem>>, vector<128x1xf32>
    %c0_4 = arith.constant 0 : index
    %c0_5 = arith.constant 0 : index
    %3 = vector.load %arg6[%c0_4, %c0_5] : memref<128x1xf32, #tpu.memory_space<vmem>>, vector<128x1xf32>
    %c0_6 = arith.constant 0 : index
    %c0_7 = arith.constant 0 : index
    %4 = vector.load %arg3[%c0_6, %c0_7] : memref<128x128xf32, #tpu.memory_space<vmem>>, vector<128x128xf32>
    %cst = arith.constant dense<0.000000e+00> : vector<128x256xf32>
    %5 = tpu.matmul %4, %1, %cst {dimension_numbers = #tpu.dot_dimension_numbers<[1], [0], [0], [1], [0, 0, 1, 1], [], []>} : vector<128x128xf32>, vector<128x256xf32>, vector<128x256xf32> -> vector<128x256xf32>
    %6 = vector.broadcast %2 : vector<128x1xf32> to vector<128x256xf32>
    %7 = arith.addf %5, %6 : vector<128x256xf32>
    %cst_8 = arith.constant 0.000000e+00 : f32
    %8 = vector.broadcast %cst_8 : f32 to vector<128x256xf32>
    %9 = arith.maximumf %7, %8 : vector<128x256xf32>
    %c0_9 = arith.constant 0 : index
    %c0_10 = arith.constant 0 : index
    %10 = vector.load %arg5[%c0_9, %c0_10] : memref<128x128xf32, #tpu.memory_space<vmem>>, vector<128x128xf32>
    %cst_11 = arith.constant dense<0.000000e+00> : vector<128x256xf32>
    %11 = tpu.matmul %10, %9, %cst_11 {dimension_numbers = #tpu.dot_dimension_numbers<[1], [0], [0], [1], [0, 0, 1, 1], [], []>} : vector<128x128xf32>, vector<128x256xf32>, vector<128x256xf32> -> vector<128x256xf32>
    %12 = vector.broadcast %3 : vector<128x1xf32> to vector<128x256xf32>
    %13 = arith.addf %11, %12 : vector<128x256xf32>
    %c0_12 = arith.constant 0 : index
    %c0_13 = arith.constant 0 : index
    %c0_14 = arith.constant 0 : index
    %14 = vector.load %arg7[%c0_12, %c0_13, %c0_14] : memref<1x128x256xf32, #tpu.memory_space<vmem>>, vector<1x128x256xf32>
    %15 = vector.shape_cast %14 : vector<1x128x256xf32> to vector<128x256xf32>
    %16 = vector.shape_cast %13 : vector<128x256xf32> to vector<1x128x256xf32>
    tpu.vector_store %arg7[%c0_12, %c0_13, %c0_14], %16 {strides = array<i32>} : memref<1x128x256xf32, #tpu.memory_space<vmem>>, vector<1x128x256xf32>,
    return
  }
  func.func @transform_0(%arg0: i32, %arg1: i32) -> (i32, i32, i32) {
    %c0_i32 = arith.constant 0 : i32
    %c0_i32_0 = arith.constant 0 : i32
    return %arg0, %c0_i32, %arg1 : i32, i32, i32
  }
  func.func @transform_1(%arg0: i32, %arg1: i32) -> (i32, i32) {
    %c0_i32 = arith.constant 0 : i32
    %c0_i32_0 = arith.constant 0 : i32
    %c0_i32_1 = arith.constant 0 : i32
    return %c0_i32, %c0_i32_0 : i32, i32
  }
  func.func @transform_2(%arg0: i32, %arg1: i32) -> (i32, i32) {
    %c0_i32 = arith.constant 0 : i32
    %c0_i32_0 = arith.constant 0 : i32
    %c0_i32_1 = arith.constant 0 : i32
    return %c0_i32, %c0_i32_0 : i32, i32
  }
  func.func @transform_3(%arg0: i32, %arg1: i32) -> (i32, i32) {
    %c0_i32 = arith.constant 0 : i32
    %c0_i32_0 = arith.constant 0 : i32
    %c0_i32_1 = arith.constant 0 : i32
    return %c0_i32, %c0_i32_0 : i32, i32
  }
  func.func @transform_4(%arg0: i32, %arg1: i32) -> (i32, i32) {
    %c0_i32 = arith.constant 0 : i32
    %c0_i32_0 = arith.constant 0 : i32
    %c0_i32_1 = arith.constant 0 : i32
    return %c0_i32, %c0_i32_0 : i32, i32
  }
  func.func @transform_5(%arg0: i32, %arg1: i32) -> (i32, i32, i32) {
    %c0_i32 = arith.constant 0 : i32
    %c0_i32_0 = arith.constant 0 : i32
    return %arg0, %c0_i32, %arg1 : i32, i32, i32
  }
}

</mosaic_0001>

<llo_original>
// kernel: tpu_custom_call.1
$region0: #{tpu_custom_call.1}
  #allocation0 [shape = 'u32[]', space=smem, size = 0x4, offset = 0x4, fixed_abs, tag = 'smem constant byte address 0x4 - core index']
  #allocation1 [shape = 'u32[144,128]{1,0:T(1,128)}', space=vmem, size = 0x12000, scoped, tag = 'internal scratch']
  %s0 = inlined_call_operand.hbm [shape: f32[2,128,256], index: 0, kind: input, shape index: {}]
  %s1 = inlined_call_operand.vmem [shape: f32[128,128], index: 1, kind: input, shape index: {}]
  %s2 = inlined_call_operand.vmem [shape: f32[128,1], index: 2, kind: input, shape index: {}]
  %s3 = inlined_call_operand.vmem [shape: f32[128,128], index: 3, kind: input, shape index: {}]
  %s4 = inlined_call_operand.vmem [shape: f32[128,1], index: 4, kind: input, shape index: {}]
  %s5 = inlined_call_operand.hbm [shape: f32[2,128,256], index: 5, kind: output, shape index: {}]
  %s6 = sld [smem:[#allocation0]]
  $region57: #{tpu_custom_call.1} parent=0
    _
  %s8 = ssub.s32 1, %s6
  %s9 = scalar_select 0, %s8, %s6
  $region1: #{tpu_custom_call.1} parent=0
    #allocation2 [shape = 'u8[262144]{0}', space=vmem, size = 0x40000, scoped, tag = 'input window, operand 0']
    #allocation3 [shape = 's32[2]{0}', space=sflag, size = 0x8, scoped, tag = 'scoped memory for tpu_custom_call.1']
    #allocation4 [shape = 's32[2]{0}', space=sflag, size = 0x8, scoped, tag = 'scoped memory for tpu_custom_call.1']
    #allocation5 [shape = 'u8[262144]{0}', space=vmem, size = 0x40000, scoped, tag = 'output window, operand 0']
    %10 = vsyncpa [#allocation3], 0
    %s11 = scalar_lea.sflag [#allocation3], 1
    %12 = vsyncpa %s11, 0
    %13 = vsyncpa [#allocation4], 0
    %s14 = scalar_lea.sflag [#allocation4], 1
    %15 = vsyncpa %s14, 0
    loop: start=0, step=1, limit=4
    $region2: #{tpu_custom_call.1} parent=1 // loop_pre_header
      _
    $region3: #{tpu_custom_call.1} parent=1 // loop_header
      %s17 = sphi 0, %s21
      %p18 = scmp.ge.s32.totalorder %s17, 4
      %s24 = sphi 0, %s36
      %s25 = sphi 0, %s32
      %s26 = sphi 0, %s24
      %s27 = sphi 0, %s25
      %s28 = sphi 0, %s26
      %s29 = sphi 0, %s27
      %s41 = sphi 0, %s43
      %s44 = sphi 0, %s41
      %s45 = sphi 0, %s44
      %s61 = sphi 0, %s45
      %s65 = sphi 0, %s65
      %s67 = sphi 0, %s65
      %s68 = sphi 0, %s67
      %s82 = sphi 0, %s68
      %s86 = sphi 0, %s86
      %s88 = sphi 0, %s86
      %s89 = sphi 0, %s88
      %s103 = sphi 0, %s89
      %s107 = sphi 0, %s107
      %s109 = sphi 0, %s107
      %s110 = sphi 0, %s109
      %s124 = sphi 0, %s110
      %s128 = sphi 0, %s128
      %s130 = sphi 0, %s128
      %s131 = sphi 0, %s130
      %s145 = sphi 0, %s131
      %s153 = sphi 0, %s155
      %s156 = sphi 0, %s153
      %s157 = sphi 0, %s156
      %s173 = sphi 0, %s157
    $region4: #{tpu_custom_call.1} parent=1 // loop_header_branch
      %20 = sbr.rel (%p18) target = $region8
    $region5: #{tpu_custom_call.1} parent=1 // loop_body
      %s22 = ssub.s32 %s17, 1
      %s23 = ssub.s32 %s17, 2
      %s30 = sadd.s32 1, %s25
      %p31 = scmp.ge.s32.totalorder %s30, 1
      %s32 = scalar_select %p31, 0, %s30
      %s33 = sadd.s32 1, %s24
      %s34 = scalar_select %p31, %s33, %s24
      %p35 = scmp.ge.s32.totalorder %s34, 2
      %s36 = scalar_select %p35, 0, %s34
      %s37 = ssub.s32 %s24, %s36
      %s38 = ssub.s32 %s25, %s32
      %s39 = sor.u32 %s37, %s38
      %p40 = scmp.eq.s32.totalorder %s39, 0
      %s42 = sadd.s32 %s41, 1
      %s43 = scalar_select %p40, %s41, %s42
      %p46 = pneg %p40
      %p47 = scmp.eq.s32.totalorder %s17, 1
      %p48 = por %p46, %p47
      %p49 = scmp.ne.s32.totalorder %s41, %s44
      %p50 = scmp.eq.s32.totalorder %s17, 0
      %p51 = por %p49, %p50
      %p52 = scmp.ne.s32.totalorder %s41, %s44
      %p53 = scmp.eq.s32.totalorder %s22, 1
      %p54 = por %p52, %p53
      %p55 = scmp.ne.s32.totalorder %s44, %s45
      %p56 = scmp.eq.s32.totalorder %s22, 0
      %p57 = por %p55, %p56
      %p58 = scmp.ne.s32.totalorder %s44, %s45
      %p59 = scmp.eq.s32.totalorder %s23, 1
      %p60 = por %p58, %p59
      %p62 = scmp.ne.s32.totalorder %s45, %s61
      %p63 = scmp.eq.s32.totalorder %s23, 0
      %p64 = por %p62, %p63
      %s66 = sadd.s32 %s65, 1
      %p69 = scmp.eq.s32.totalorder %s17, 1
      %p70 = scmp.ne.s32.totalorder %s65, %s67
      %p71 = scmp.eq.s32.totalorder %s17, 0
      %p72 = por %p70, %p71
      %p73 = scmp.ne.s32.totalorder %s65, %s67
      %p74 = scmp.eq.s32.totalorder %s22, 1
      %p75 = por %p73, %p74
      %p76 = scmp.ne.s32.totalorder %s67, %s68
      %p77 = scmp.eq.s32.totalorder %s22, 0
      %p78 = por %p76, %p77
      %p79 = scmp.ne.s32.totalorder %s67, %s68
      %p80 = scmp.eq.s32.totalorder %s23, 1
      %p81 = por %p79, %p80
      %p83 = scmp.ne.s32.totalorder %s68, %s82
      %p84 = scmp.eq.s32.totalorder %s23, 0
      %p85 = por %p83, %p84
      %s87 = sadd.s32 %s86, 1
      %p90 = scmp.eq.s32.totalorder %s17, 1
      %p91 = scmp.ne.s32.totalorder %s86, %s88
      %p92 = scmp.eq.s32.totalorder %s17, 0
      %p93 = por %p91, %p92
      %p94 = scmp.ne.s32.totalorder %s86, %s88
      %p95 = scmp.eq.s32.totalorder %s22, 1
      %p96 = por %p94, %p95
      %p97 = scmp.ne.s32.totalorder %s88, %s89
      %p98 = scmp.eq.s32.totalorder %s22, 0
      %p99 = por %p97, %p98
      %p100 = scmp.ne.s32.totalorder %s88, %s89
      %p101 = scmp.eq.s32.totalorder %s23, 1
      %p102 = por %p100, %p101
      %p104 = scmp.ne.s32.totalorder %s89, %s103
      %p105 = scmp.eq.s32.totalorder %s23, 0
      %p106 = por %p104, %p105
      %s108 = sadd.s32 %s107, 1
      %p111 = scmp.eq.s32.totalorder %s17, 1
      %p112 = scmp.ne.s32.totalorder %s107, %s109
      %p113 = scmp.eq.s32.totalorder %s17, 0
      %p114 = por %p112, %p113
      %p115 = scmp.ne.s32.totalorder %s107, %s109
      %p116 = scmp.eq.s32.totalorder %s22, 1
      %p117 = por %p115, %p116
      %p118 = scmp.ne.s32.totalorder %s109, %s110
      %p119 = scmp.eq.s32.totalorder %s22, 0
      %p120 = por %p118, %p119
      %p121 = scmp.ne.s32.totalorder %s109, %s110
      %p122 = scmp.eq.s32.totalorder %s23, 1
      %p123 = por %p121, %p122
      %p125 = scmp.ne.s32.totalorder %s110, %s124
      %p126 = scmp.eq.s32.totalorder %s23, 0
      %p127 = por %p125, %p126
      %s129 = sadd.s32 %s128, 1
      %p132 = scmp.eq.s32.totalorder %s17, 1
      %p133 = scmp.ne.s32.totalorder %s128, %s130
      %p134 = scmp.eq.s32.totalorder %s17, 0
      %p135 = por %p133, %p134
      %p136 = scmp.ne.s32.totalorder %s128, %s130
      %p137 = scmp.eq.s32.totalorder %s22, 1
      %p138 = por %p136, %p137
      %p139 = scmp.ne.s32.totalorder %s130, %s131
      %p140 = scmp.eq.s32.totalorder %s22, 0
      %p141 = por %p139, %p140
      %p142 = scmp.ne.s32.totalorder %s130, %s131
      %p143 = scmp.eq.s32.totalorder %s23, 1
      %p144 = por %p142, %p143
      %p146 = scmp.ne.s32.totalorder %s131, %s145
      %p147 = scmp.eq.s32.totalorder %s23, 0
      %p148 = por %p146, %p147
      %s149 = ssub.s32 %s24, %s36
      %s150 = ssub.s32 %s25, %s32
      %s151 = sor.u32 %s149, %s150
      %p152 = scmp.eq.s32.totalorder %s151, 0
      %s154 = sadd.s32 %s153, 1
      %s155 = scalar_select %p152, %s153, %s154
      %p158 = pneg %p152
      %p159 = scmp.eq.s32.totalorder %s17, 1
      %p160 = por %p158, %p159
      %p161 = scmp.ne.s32.totalorder %s153, %s156
      %p162 = scmp.eq.s32.totalorder %s17, 0
      %p163 = por %p161, %p162
      %p164 = scmp.ne.s32.totalorder %s153, %s156
      %p165 = scmp.eq.s32.totalorder %s22, 1
      %p166 = por %p164, %p165
      %p167 = scmp.ne.s32.totalorder %s156, %s157
      %p168 = scmp.eq.s32.totalorder %s22, 0
      %p169 = por %p167, %p168
      %p170 = scmp.ne.s32.totalorder %s156, %s157
      %p171 = scmp.eq.s32.totalorder %s23, 1
      %p172 = por %p170, %p171
      %p174 = scmp.ne.s32.totalorder %s157, %s173
      %p175 = scmp.eq.s32.totalorder %s23, 0
      %p176 = por %p174, %p175
      %p177 = scmp.le.s32.totalorder 1, %s17
      %p178 = scmp.lt.s32.totalorder %s17, 3
      %p179 = pnand %p177, %p178
      %p180 = pneg %p179
      // Predicated region
      $region9: #{tpu_custom_call.1} parent=5 // pred_check
        _
      $region10: #{tpu_custom_call.1} parent=5 // pred_check_branch
        %182 = sbr.rel (%p179) target = $region12
      $region11: #{tpu_custom_call.1} parent=5 // pred_region
        %s183 = ssub.s32 %s17, 1
        // Predicated region
        $region13: #{tpu_custom_call.1} parent=11 // pred_check
          %p184 = pneg %p78
        $region14: #{tpu_custom_call.1} parent=11 // pred_check_branch
          %186 = sbr.rel (%p184) target = $region16
        $region15: #{tpu_custom_call.1} parent=11 // pred_region
          _
        $region16: #{tpu_custom_call.1} parent=11 // pred_fallthru
          _
        // Predicated region
        $region17: #{tpu_custom_call.1} parent=11 // pred_check
          %p187 = pneg %p99
        $region18: #{tpu_custom_call.1} parent=11 // pred_check_branch
          %189 = sbr.rel (%p187) target = $region20
        $region19: #{tpu_custom_call.1} parent=11 // pred_region
          _
        $region20: #{tpu_custom_call.1} parent=11 // pred_fallthru
          _
        // Predicated region
        $region21: #{tpu_custom_call.1} parent=11 // pred_check
          %p190 = pneg %p120
        $region22: #{tpu_custom_call.1} parent=11 // pred_check_branch
          %192 = sbr.rel (%p190) target = $region24
        $region23: #{tpu_custom_call.1} parent=11 // pred_region
          _
        $region24: #{tpu_custom_call.1} parent=11 // pred_fallthru
          _
        // Predicated region
        $region25: #{tpu_custom_call.1} parent=11 // pred_check
          %p193 = pneg %p141
        $region26: #{tpu_custom_call.1} parent=11 // pred_check_branch
          %195 = sbr.rel (%p193) target = $region28
        $region27: #{tpu_custom_call.1} parent=11 // pred_region
          _
        $region28: #{tpu_custom_call.1} parent=11 // pred_fallthru
          _
      $region12: #{tpu_custom_call.1} parent=5 // pred_fallthru
        _
      %p196 = scmp.lt.s32.totalorder %s17, 2
      // Predicated region
      $region29: #{tpu_custom_call.1} parent=5 // pred_check
        %p197 = pneg %p196
      $region30: #{tpu_custom_call.1} parent=5 // pred_check_branch
        %199 = sbr.rel (%p197) target = $region32
      $region31: #{tpu_custom_call.1} parent=5 // pred_region
        // Predicated region
        $region33: #{tpu_custom_call.1} parent=31 // pred_check
          %p200 = pneg %p51
        $region34: #{tpu_custom_call.1} parent=31 // pred_check_branch
          %202 = sbr.rel (%p200) target = $region36
        $region35: #{tpu_custom_call.1} parent=31 // pred_region
          %s203 = sand.u32 %s41, 1
          %s204 = scalar_lea.sflag [#allocation3], %s203
          %s205 = sand.u32 %s41, 1
          %s206 = smul.addr %s205, 256
          %s207 = scalar_lea.vmem [#allocation2], %s206
          %s208 = smul.u32 2, %s25
          %s210 = ssub.s32 4096, 4096
          %211 = vsyncadd %s204, %s210
          %s212 = smul.addr %s24, 32
          %s213 = sadd.s32 %s208, %s212
          %s214 = smul.addr %s213, 128
          %s215 = scalar_lea.hbm %s0, %s214
          %s216 = sshll.u32 %s207, 4
          %s217 = int_to_ptr.vmem [resolvable:$true] %s216
          %222 = dma.hbm_to_vmem [thread:$0]  %s215, 4096, %s217, %s204, 256, 256, 16
        $region36: #{tpu_custom_call.1} parent=31 // pred_fallthru
          _
      $region32: #{tpu_custom_call.1} parent=5 // pred_fallthru
        _
      %p223 = scmp.le.s32.totalorder 1, %s17
      %p224 = scmp.lt.s32.totalorder %s17, 3
      %p225 = pnand %p223, %p224
      %p226 = pneg %p225
      // Predicated region
      $region37: #{tpu_custom_call.1} parent=5 // pred_check
        _
      $region38: #{tpu_custom_call.1} parent=5 // pred_check_branch
        %228 = sbr.rel (%p225) target = $region40
      $region39: #{tpu_custom_call.1} parent=5 // pred_region
        %s229 = ssub.s32 %s17, 1
        %s230 = sand.u32 %s44, 1
        %s231 = scalar_lea.sflag [#allocation3], %s230
        %s232 = sand.u32 %s44, 1
        %s233 = smul.addr %s232, 256
        %s234 = scalar_lea.vmem [#allocation2], %s233
        // Predicated region
        $region41: #{tpu_custom_call.1} parent=39 // pred_check
          %p235 = pneg %p57
        $region42: #{tpu_custom_call.1} parent=39 // pred_check_branch
          %237 = sbr.rel (%p235) target = $region44
        $region43: #{tpu_custom_call.1} parent=39 // pred_region
          %238 = dma.done %s231, 4096
        $region44: #{tpu_custom_call.1} parent=39 // pred_fallthru
          _
        %s239 = sand.u32 %s44, 1
        %s240 = scalar_lea.sflag [#allocation3], %s239
        %s241 = sand.u32 %s44, 1
        %s242 = smul.addr %s241, 256
        %s243 = scalar_lea.vmem [#allocation2], %s242
        %p244 = pneg %p57
        %p245 = pneg %p54
        %p246 = pneg %p78
        %p247 = pneg %p75
        %p248 = pneg %p99
        %p249 = pneg %p96
        %p250 = pneg %p120
        %p251 = pneg %p117
        %p252 = pneg %p141
        %p253 = pneg %p138
        %p254 = pneg %p169
        %p255 = pneg %p166
        %s256 = sand.u32 %s156, 1
        %s257 = scalar_lea.sflag [#allocation4], %s256
        %s258 = sand.u32 %s156, 1
        %s259 = smul.addr %s258, 256
        %s260 = scalar_lea.vmem [#allocation5], %s259
        %s261 = smul.u32 2, %s27
        %s262 = smul.u32 2, %s27
        %v263 = vld [vmem:[%s234] sm:$0xff]
        %v264 = vld [vmem:[%s234 + $0x8] sm:$0xff]
        %v265 = vld [vmem:[%s234 + $0x10] sm:$0xff]
        %v266 = vld [vmem:[%s234 + $0x18] sm:$0xff]
        %v267 = vld [vmem:[%s234 + $0x20] sm:$0xff]
        %v268 = vld [vmem:[%s234 + $0x28] sm:$0xff]
        %v269 = vld [vmem:[%s234 + $0x30] sm:$0xff]
        %v270 = vld [vmem:[%s234 + $0x38] sm:$0xff]
        %v271 = vld [vmem:[%s234 + $0x40] sm:$0xff]
        %v272 = vld [vmem:[%s234 + $0x48] sm:$0xff]
        %v273 = vld [vmem:[%s234 + $0x50] sm:$0xff]
        %v274 = vld [vmem:[%s234 + $0x58] sm:$0xff]
        %v275 = vld [vmem:[%s234 + $0x60] sm:$0xff]
        %v276 = vld [vmem:[%s234 + $0x68] sm:$0xff]
        %v277 = vld [vmem:[%s234 + $0x70] sm:$0xff]
        %v278 = vld [vmem:[%s234 + $0x78] sm:$0xff]
        %v279 = vld [vmem:[%s234 + $0x80] sm:$0xff]
        %v280 = vld [vmem:[%s234 + $0x88] sm:$0xff]
        %v281 = vld [vmem:[%s234 + $0x90] sm:$0xff]
        %v282 = vld [vmem:[%s234 + $0x98] sm:$0xff]
        %v283 = vld [vmem:[%s234 + $0xa0] sm:$0xff]
        %v284 = vld [vmem:[%s234 + $0xa8] sm:$0xff]
        %v285 = vld [vmem:[%s234 + $0xb0] sm:$0xff]
        %v286 = vld [vmem:[%s234 + $0xb8] sm:$0xff]
        %v287 = vld [vmem:[%s234 + $0xc0] sm:$0xff]
        %v288 = vld [vmem:[%s234 + $0xc8] sm:$0xff]
        %v289 = vld [vmem:[%s234 + $0xd0] sm:$0xff]
        %v290 = vld [vmem:[%s234 + $0xd8] sm:$0xff]
        %v291 = vld [vmem:[%s234 + $0xe0] sm:$0xff]
        %v292 = vld [vmem:[%s234 + $0xe8] sm:$0xff]
        %v293 = vld [vmem:[%s234 + $0xf0] sm:$0xff]
        %v294 = vld [vmem:[%s234 + $0xf8] sm:$0xff]
        %v295 = vld [vmem:[%s2] sm:$0xff]
        %v296 = vld [vmem:[%s2 + $0x8] sm:$0xff]
        %v297 = vld [vmem:[%s2 + $0x10] sm:$0xff]
        %v298 = vld [vmem:[%s2 + $0x18] sm:$0xff]
        %v299 = vld [vmem:[%s2 + $0x20] sm:$0xff]
        %v300 = vld [vmem:[%s2 + $0x28] sm:$0xff]
        %v301 = vld [vmem:[%s2 + $0x30] sm:$0xff]
        %v302 = vld [vmem:[%s2 + $0x38] sm:$0xff]
        %v303 = vld [vmem:[%s2 + $0x40] sm:$0xff]
        %v304 = vld [vmem:[%s2 + $0x48] sm:$0xff]
        %v305 = vld [vmem:[%s2 + $0x50] sm:$0xff]
        %v306 = vld [vmem:[%s2 + $0x58] sm:$0xff]
        %v307 = vld [vmem:[%s2 + $0x60] sm:$0xff]
        %v308 = vld [vmem:[%s2 + $0x68] sm:$0xff]
        %v309 = vld [vmem:[%s2 + $0x70] sm:$0xff]
        %v310 = vld [vmem:[%s2 + $0x78] sm:$0xff]
        %v311 = vld [vmem:[%s4] sm:$0xff]
        %v312 = vld [vmem:[%s4 + $0x8] sm:$0xff]
        %v313 = vld [vmem:[%s4 + $0x10] sm:$0xff]
        %v314 = vld [vmem:[%s4 + $0x18] sm:$0xff]
        %v315 = vld [vmem:[%s4 + $0x20] sm:$0xff]
        %v316 = vld [vmem:[%s4 + $0x28] sm:$0xff]
        %v317 = vld [vmem:[%s4 + $0x30] sm:$0xff]
        %v318 = vld [vmem:[%s4 + $0x38] sm:$0xff]
        %v319 = vld [vmem:[%s4 + $0x40] sm:$0xff]
        %v320 = vld [vmem:[%s4 + $0x48] sm:$0xff]
        %v321 = vld [vmem:[%s4 + $0x50] sm:$0xff]
        %v322 = vld [vmem:[%s4 + $0x58] sm:$0xff]
        %v323 = vld [vmem:[%s4 + $0x60] sm:$0xff]
        %v324 = vld [vmem:[%s4 + $0x68] sm:$0xff]
        %v325 = vld [vmem:[%s4 + $0x70] sm:$0xff]
        %v326 = vld [vmem:[%s4 + $0x78] sm:$0xff]
        %v327 = vld [vmem:[%s1] sm:$0xff]
        %v328 = vld [vmem:[%s1 + $0x8] sm:$0xff]
        %v329 = vld [vmem:[%s1 + $0x10] sm:$0xff]
        %v330 = vld [vmem:[%s1 + $0x18] sm:$0xff]
        %v331 = vld [vmem:[%s1 + $0x20] sm:$0xff]
        %v332 = vld [vmem:[%s1 + $0x28] sm:$0xff]
        %v333 = vld [vmem:[%s1 + $0x30] sm:$0xff]
        %v334 = vld [vmem:[%s1 + $0x38] sm:$0xff]
        %v335 = vld [vmem:[%s1 + $0x40] sm:$0xff]
        %v336 = vld [vmem:[%s1 + $0x48] sm:$0xff]
        %v337 = vld [vmem:[%s1 + $0x50] sm:$0xff]
        %v338 = vld [vmem:[%s1 + $0x58] sm:$0xff]
        %v339 = vld [vmem:[%s1 + $0x60] sm:$0xff]
        %v340 = vld [vmem:[%s1 + $0x68] sm:$0xff]
        %v341 = vld [vmem:[%s1 + $0x70] sm:$0xff]
        %v342 = vld [vmem:[%s1 + $0x78] sm:$0xff]
        %344 = vset.pattern.permute.xlu0 0
        %345 = vperm.xlu0 %344, %v295
        %v346 = vpop.permute.xlu0 %345
        %349 = vset.pattern.permute.xlu0 0
        %350 = vperm.xlu0 %349, %v296
        %v351 = vpop.permute.xlu0 %350
        %354 = vset.pattern.permute.xlu0 0
        %355 = vperm.xlu0 %354, %v297
        %v356 = vpop.permute.xlu0 %355
        %359 = vset.pattern.permute.xlu0 0
        %360 = vperm.xlu0 %359, %v298
        %v361 = vpop.permute.xlu0 %360
        %364 = vset.pattern.permute.xlu0 0
        %365 = vperm.xlu0 %364, %v299
        %v366 = vpop.permute.xlu0 %365
        %369 = vset.pattern.permute.xlu0 0
        %370 = vperm.xlu0 %369, %v300
        %v371 = vpop.permute.xlu0 %370
        %374 = vset.pattern.permute.xlu0 0
        %375 = vperm.xlu0 %374, %v301
        %v376 = vpop.permute.xlu0 %375
        %379 = vset.pattern.permute.xlu0 0
        %380 = vperm.xlu0 %379, %v302
        %v381 = vpop.permute.xlu0 %380
        %384 = vset.pattern.permute.xlu0 0
        %385 = vperm.xlu0 %384, %v303
        %v386 = vpop.permute.xlu0 %385
        %389 = vset.pattern.permute.xlu0 0
        %390 = vperm.xlu0 %389, %v304
        %v391 = vpop.permute.xlu0 %390
        %394 = vset.pattern.permute.xlu0 0
        %395 = vperm.xlu0 %394, %v305
        %v396 = vpop.permute.xlu0 %395
        %399 = vset.pattern.permute.xlu0 0
        %400 = vperm.xlu0 %399, %v306
        %v401 = vpop.permute.xlu0 %400
        %404 = vset.pattern.permute.xlu0 0
        %405 = vperm.xlu0 %404, %v307
        %v406 = vpop.permute.xlu0 %405
        %409 = vset.pattern.permute.xlu0 0
        %410 = vperm.xlu0 %409, %v308
        %v411 = vpop.permute.xlu0 %410
        %414 = vset.pattern.permute.xlu0 0
        %415 = vperm.xlu0 %414, %v309
        %v416 = vpop.permute.xlu0 %415
        %419 = vset.pattern.permute.xlu0 0
        %420 = vperm.xlu0 %419, %v310
        %v421 = vpop.permute.xlu0 %420
        %423 = vmatprep.subr.mxu0 %v264
        %424 = vmatpush1.msra.mxu0 %v263
        %425 = vmatprep.subr.mxu0 %v266
        %426 = vmatpush1.msra.mxu0 %v265
        %427 = vmatprep.subr.mxu0 %v268
        %428 = vmatpush1.msra.mxu0 %v267
        %429 = vmatprep.subr.mxu0 %v270
        %430 = vmatpush1.msra.mxu0 %v269
        %431 = vmatprep.subr.mxu0 %v272
        %432 = vmatpush1.msra.mxu0 %v271
        %433 = vmatprep.subr.mxu0 %v274
        %434 = vmatpush1.msra.mxu0 %v273
        %435 = vmatprep.subr.mxu0 %v276
        %436 = vmatpush1.msra.mxu0 %v275
        %437 = vmatprep.subr.mxu0 %v278
        %438 = vmatpush1.msra.mxu0 %v277
        %439 = vmatprep.subr.mxu0 %v280
        %440 = vmatpush1.msra.mxu0 %v279
        %441 = vmatprep.subr.mxu0 %v282
        %442 = vmatpush1.msra.mxu0 %v281
        %443 = vmatprep.subr.mxu0 %v284
        %444 = vmatpush1.msra.mxu0 %v283
        %445 = vmatprep.subr.mxu0 %v286
        %446 = vmatpush1.msra.mxu0 %v285
        %447 = vmatprep.subr.mxu0 %v288
        %448 = vmatpush1.msra.mxu0 %v287
        %449 = vmatprep.subr.mxu0 %v290
        %450 = vmatpush1.msra.mxu0 %v289
        %451 = vmatprep.subr.mxu0 %v292
        %452 = vmatpush1.msra.mxu0 %v291
        %453 = vmatprep.subr.mxu0 %v294
        %454 = vmatpush1.msra.mxu0 %v293
        %455 = vmatprep.subr.mxu0 0.0
        %456 = vmatpush1.msra.mxu0 0.0
        %457 = vmatprep.subr.mxu0 0.0
        %458 = vmatpush1.msra.mxu0 0.0
        %459 = vmatprep.subr.mxu0 0.0
        %460 = vmatpush1.msra.mxu0 0.0
        %461 = vmatprep.subr.mxu0 0.0
        %462 = vmatpush1.msra.mxu0 0.0
        %463 = vmatprep.subr.mxu0 0.0
        %464 = vmatpush1.msra.mxu0 0.0
        %465 = vmatprep.subr.mxu0 0.0
        %466 = vmatpush1.msra.mxu0 0.0
        %467 = vmatprep.subr.mxu0 0.0
        %468 = vmatpush1.msra.mxu0 0.0
        %469 = vmatprep.subr.mxu0 0.0
        %470 = vmatpush1.msra.mxu0 0.0
        %471 = vmatprep.subr.mxu0 0.0
        %472 = vmatpush1.msra.mxu0 0.0
        %473 = vmatprep.subr.mxu0 0.0
        %474 = vmatpush1.msra.mxu0 0.0
        %475 = vmatprep.subr.mxu0 0.0
        %476 = vmatpush1.msra.mxu0 0.0
        %477 = vmatprep.subr.mxu0 0.0
        %478 = vmatpush1.msra.mxu0 0.0
        %479 = vmatprep.subr.mxu0 0.0
        %480 = vmatpush1.msra.mxu0 0.0
        %481 = vmatprep.subr.mxu0 0.0
        %482 = vmatpush1.msra.mxu0 0.0
        %483 = vmatprep.subr.mxu0 0.0
        %484 = vmatpush1.msra.mxu0 0.0
        %485 = vmatprep.subr.mxu0 0.0
        %486 = vmatpush1.msra.mxu0 0.0
        %487 = vmatprep.mubr.f32.mxu0 0.0
        %488 = vmatmul.mubr.f32.gmra.mrb[0].mxu0 %v327
        %v489 = vpop.f32.mrb[0].mxu0
        %v490 = vadd.f32 %v346, %v489
        %v491 = vpop.f32.mrb[0].mxu0
        %v492 = vadd.f32 %v346, %v491
        %493 = vmatprep.mubr.f32.mxu0 0.0
        %494 = vmatmul.mubr.f32.gmra.mrb[0].mxu0 %v328
        %v495 = vpop.f32.mrb[0].mxu0
        %v496 = vadd.f32 %v351, %v495
        %v497 = vpop.f32.mrb[0].mxu0
        %v498 = vadd.f32 %v351, %v497
        %499 = vmatprep.mubr.f32.mxu0 0.0
        %500 = vmatmul.mubr.f32.gmra.mrb[0].mxu0 %v329
        %v501 = vpop.f32.mrb[0].mxu0
        %v502 = vadd.f32 %v356, %v501
        %v503 = vpop.f32.mrb[0].mxu0
        %v504 = vadd.f32 %v356, %v503
        %505 = vmatprep.mubr.f32.mxu0 0.0
        %506 = vmatmul.mubr.f32.gmra.mrb[0].mxu0 %v330
        %v507 = vpop.f32.mrb[0].mxu0
        %v508 = vadd.f32 %v361, %v507
        %v509 = vpop.f32.mrb[0].mxu0
        %v510 = vadd.f32 %v361, %v509
        %511 = vmatprep.mubr.f32.mxu0 0.0
        %512 = vmatmul.mubr.f32.gmra.mrb[0].mxu0 %v331
        %v513 = vpop.f32.mrb[0].mxu0
        %v514 = vadd.f32 %v366, %v513
        %v515 = vpop.f32.mrb[0].mxu0
        %v516 = vadd.f32 %v366, %v515
        %517 = vmatprep.mubr.f32.mxu0 0.0
        %518 = vmatmul.mubr.f32.gmra.mrb[0].mxu0 %v332
        %v519 = vpop.f32.mrb[0].mxu0
        %v520 = vadd.f32 %v371, %v519
        %v521 = vpop.f32.mrb[0].mxu0
        %v522 = vadd.f32 %v371, %v521
        %523 = vmatprep.mubr.f32.mxu0 0.0
        %524 = vmatmul.mubr.f32.gmra.mrb[0].mxu0 %v333
        %v525 = vpop.f32.mrb[0].mxu0
        %v526 = vadd.f32 %v376, %v525
        %v527 = vpop.f32.mrb[0].mxu0
        %v528 = vadd.f32 %v376, %v527
        %529 = vmatprep.mubr.f32.mxu0 0.0
        %530 = vmatmul.mubr.f32.gmra.mrb[0].mxu0 %v334
        %v531 = vpop.f32.mrb[0].mxu0
        %v532 = vadd.f32 %v381, %v531
        %v533 = vpop.f32.mrb[0].mxu0
        %v534 = vadd.f32 %v381, %v533
        %535 = vmatprep.mubr.f32.mxu0 0.0
        %536 = vmatmul.mubr.f32.gmra.mrb[0].mxu0 %v335
        %v537 = vpop.f32.mrb[0].mxu0
        %v538 = vadd.f32 %v386, %v537
        %v539 = vpop.f32.mrb[0].mxu0
        %v540 = vadd.f32 %v386, %v539
        %541 = vmatprep.mubr.f32.mxu0 0.0
        %542 = vmatmul.mubr.f32.gmra.mrb[0].mxu0 %v336
        %v543 = vpop.f32.mrb[0].mxu0
        %v544 = vadd.f32 %v391, %v543
        %v545 = vpop.f32.mrb[0].mxu0
        %v546 = vadd.f32 %v391, %v545
        %547 = vmatprep.mubr.f32.mxu0 0.0
        %548 = vmatmul.mubr.f32.gmra.mrb[0].mxu0 %v337
        %v549 = vpop.f32.mrb[0].mxu0
        %v550 = vadd.f32 %v396, %v549
        %v551 = vpop.f32.mrb[0].mxu0
        %v552 = vadd.f32 %v396, %v551
        %553 = vmatprep.mubr.f32.mxu0 0.0
        %554 = vmatmul.mubr.f32.gmra.mrb[0].mxu0 %v338
        %v555 = vpop.f32.mrb[0].mxu0
        %v556 = vadd.f32 %v401, %v555
        %v557 = vpop.f32.mrb[0].mxu0
        %v558 = vadd.f32 %v401, %v557
        %559 = vmatprep.mubr.f32.mxu0 0.0
        %560 = vmatmul.mubr.f32.gmra.mrb[0].mxu0 %v339
        %v561 = vpop.f32.mrb[0].mxu0
        %v562 = vadd.f32 %v406, %v561
        %v563 = vpop.f32.mrb[0].mxu0
        %v564 = vadd.f32 %v406, %v563
        %565 = vmatprep.mubr.f32.mxu0 0.0
        %566 = vmatmul.mubr.f32.gmra.mrb[0].mxu0 %v340
        %v567 = vpop.f32.mrb[0].mxu0
        %v568 = vadd.f32 %v411, %v567
        %v569 = vpop.f32.mrb[0].mxu0
        %v570 = vadd.f32 %v411, %v569
        %571 = vmatprep.mubr.f32.mxu0 0.0
        %572 = vmatmul.mubr.f32.gmra.mrb[0].mxu0 %v341
        %v573 = vpop.f32.mrb[0].mxu0
        %v574 = vadd.f32 %v416, %v573
        %v575 = vpop.f32.mrb[0].mxu0
        %v576 = vadd.f32 %v416, %v575
        %577 = vmatprep.mubr.f32.mxu0 0.0
        %578 = vmatmul.mubr.f32.gmra.mrb[0].mxu0 %v342
        %v579 = vpop.f32.mrb[0].mxu0
        %v580 = vadd.f32 %v421, %v579
        %v581 = vpop.f32.mrb[0].mxu0
        %v582 = vadd.f32 %v421, %v581
        %583 = vdwg.mxu0
        %v584 = vmax.f32 %v490, 0.0
        %v585 = vmax.f32 %v492, 0.0
        %v586 = vmax.f32 %v496, 0.0
        %v587 = vmax.f32 %v498, 0.0
        %v588 = vmax.f32 %v502, 0.0
        %v589 = vmax.f32 %v504, 0.0
        %v590 = vmax.f32 %v508, 0.0
        %v591 = vmax.f32 %v510, 0.0
        %v592 = vmax.f32 %v514, 0.0
        %v593 = vmax.f32 %v516, 0.0
        %v594 = vmax.f32 %v520, 0.0
        %v595 = vmax.f32 %v522, 0.0
        %v596 = vmax.f32 %v526, 0.0
        %v597 = vmax.f32 %v528, 0.0
        %v598 = vmax.f32 %v532, 0.0
        %v599 = vmax.f32 %v534, 0.0
        %v600 = vmax.f32 %v538, 0.0
        %v601 = vmax.f32 %v540, 0.0
        %v602 = vmax.f32 %v544, 0.0
        %v603 = vmax.f32 %v546, 0.0
        %v604 = vmax.f32 %v550, 0.0
        %v605 = vmax.f32 %v552, 0.0
        %v606 = vmax.f32 %v556, 0.0
        %v607 = vmax.f32 %v558, 0.0
        %v608 = vmax.f32 %v562, 0.0
        %v609 = vmax.f32 %v564, 0.0
        %v610 = vmax.f32 %v568, 0.0
        %v611 = vmax.f32 %v570, 0.0
        %v612 = vmax.f32 %v574, 0.0
        %v613 = vmax.f32 %v576, 0.0
        %v614 = vmax.f32 %v580, 0.0
        %v615 = vmax.f32 %v582, 0.0
        %v616 = vld [vmem:[%s3] sm:$0xff]
        %v617 = vld [vmem:[%s3 + $0x8] sm:$0xff]
        %v618 = vld [vmem:[%s3 + $0x10] sm:$0xff]
        %v619 = vld [vmem:[%s3 + $0x18] sm:$0xff]
        %v620 = vld [vmem:[%s3 + $0x20] sm:$0xff]
        %v621 = vld [vmem:[%s3 + $0x28] sm:$0xff]
        %v622 = vld [vmem:[%s3 + $0x30] sm:$0xff]
        %v623 = vld [vmem:[%s3 + $0x38] sm:$0xff]
        %v624 = vld [vmem:[%s3 + $0x40] sm:$0xff]
        %v625 = vld [vmem:[%s3 + $0x48] sm:$0xff]
        %v626 = vld [vmem:[%s3 + $0x50] sm:$0xff]
        %v627 = vld [vmem:[%s3 + $0x58] sm:$0xff]
        %v628 = vld [vmem:[%s3 + $0x60] sm:$0xff]
        %v629 = vld [vmem:[%s3 + $0x68] sm:$0xff]
        %v630 = vld [vmem:[%s3 + $0x70] sm:$0xff]
        %v631 = vld [vmem:[%s3 + $0x78] sm:$0xff]
        %633 = vset.pattern.permute.xlu0 0
        %634 = vperm.xlu0 %633, %v311
        %v635 = vpop.permute.xlu0 %634
        %638 = vset.pattern.permute.xlu0 0
        %639 = vperm.xlu0 %638, %v312
        %v640 = vpop.permute.xlu0 %639
        %643 = vset.pattern.permute.xlu0 0
        %644 = vperm.xlu0 %643, %v313
        %v645 = vpop.permute.xlu0 %644
        %648 = vset.pattern.permute.xlu0 0
        %649 = vperm.xlu0 %648, %v314
        %v650 = vpop.permute.xlu0 %649
        %653 = vset.pattern.permute.xlu0 0
        %654 = vperm.xlu0 %653, %v315
        %v655 = vpop.permute.xlu0 %654
        %658 = vset.pattern.permute.xlu0 0
        %659 = vperm.xlu0 %658, %v316
        %v660 = vpop.permute.xlu0 %659
        %663 = vset.pattern.permute.xlu0 0
        %664 = vperm.xlu0 %663, %v317
        %v665 = vpop.permute.xlu0 %664
        %668 = vset.pattern.permute.xlu0 0
        %669 = vperm.xlu0 %668, %v318
        %v670 = vpop.permute.xlu0 %669
        %673 = vset.pattern.permute.xlu0 0
        %674 = vperm.xlu0 %673, %v319
        %v675 = vpop.permute.xlu0 %674
        %678 = vset.pattern.permute.xlu0 0
        %679 = vperm.xlu0 %678, %v320
        %v680 = vpop.permute.xlu0 %679
        %683 = vset.pattern.permute.xlu0 0
        %684 = vperm.xlu0 %683, %v321
        %v685 = vpop.permute.xlu0 %684
        %688 = vset.pattern.permute.xlu0 0
        %689 = vperm.xlu0 %688, %v322
        %v690 = vpop.permute.xlu0 %689
        %693 = vset.pattern.permute.xlu0 0
        %694 = vperm.xlu0 %693, %v323
        %v695 = vpop.permute.xlu0 %694
        %698 = vset.pattern.permute.xlu0 0
        %699 = vperm.xlu0 %698, %v324
        %v700 = vpop.permute.xlu0 %699
        %703 = vset.pattern.permute.xlu0 0
        %704 = vperm.xlu0 %703, %v325
        %v705 = vpop.permute.xlu0 %704
        %708 = vset.pattern.permute.xlu0 0
        %709 = vperm.xlu0 %708, %v326
        %v710 = vpop.permute.xlu0 %709
        %712 = vmatprep.subr.mxu0 %v585
        %713 = vmatpush1.msra.mxu0 %v584
        %714 = vmatprep.subr.mxu0 %v587
        %715 = vmatpush1.msra.mxu0 %v586
        %716 = vmatprep.subr.mxu0 %v589
        %717 = vmatpush1.msra.mxu0 %v588
        %718 = vmatprep.subr.mxu0 %v591
        %719 = vmatpush1.msra.mxu0 %v590
        %720 = vmatprep.subr.mxu0 %v593
        %721 = vmatpush1.msra.mxu0 %v592
        %722 = vmatprep.subr.mxu0 %v595
        %723 = vmatpush1.msra.mxu0 %v594
        %724 = vmatprep.subr.mxu0 %v597
        %725 = vmatpush1.msra.mxu0 %v596
        %726 = vmatprep.subr.mxu0 %v599
        %727 = vmatpush1.msra.mxu0 %v598
        %728 = vmatprep.subr.mxu0 %v601
        %729 = vmatpush1.msra.mxu0 %v600
        %730 = vmatprep.subr.mxu0 %v603
        %731 = vmatpush1.msra.mxu0 %v602
        %732 = vmatprep.subr.mxu0 %v605
        %733 = vmatpush1.msra.mxu0 %v604
        %734 = vmatprep.subr.mxu0 %v607
        %735 = vmatpush1.msra.mxu0 %v606
        %736 = vmatprep.subr.mxu0 %v609
        %737 = vmatpush1.msra.mxu0 %v608
        %738 = vmatprep.subr.mxu0 %v611
        %739 = vmatpush1.msra.mxu0 %v610
        %740 = vmatprep.subr.mxu0 %v613
        %741 = vmatpush1.msra.mxu0 %v612
        %742 = vmatprep.subr.mxu0 %v615
        %743 = vmatpush1.msra.mxu0 %v614
        %744 = vmatprep.subr.mxu0 0.0
        %745 = vmatpush1.msra.mxu0 0.0
        %746 = vmatprep.subr.mxu0 0.0
        %747 = vmatpush1.msra.mxu0 0.0
        %748 = vmatprep.subr.mxu0 0.0
        %749 = vmatpush1.msra.mxu0 0.0
        %750 = vmatprep.subr.mxu0 0.0
        %751 = vmatpush1.msra.mxu0 0.0
        %752 = vmatprep.subr.mxu0 0.0
        %753 = vmatpush1.msra.mxu0 0.0
        %754 = vmatprep.subr.mxu0 0.0
        %755 = vmatpush1.msra.mxu0 0.0
        %756 = vmatprep.subr.mxu0 0.0
        %757 = vmatpush1.msra.mxu0 0.0
        %758 = vmatprep.subr.mxu0 0.0
        %759 = vmatpush1.msra.mxu0 0.0
        %760 = vmatprep.subr.mxu0 0.0
        %761 = vmatpush1.msra.mxu0 0.0
        %762 = vmatprep.subr.mxu0 0.0
        %763 = vmatpush1.msra.mxu0 0.0
        %764 = vmatprep.subr.mxu0 0.0
        %765 = vmatpush1.msra.mxu0 0.0
        %766 = vmatprep.subr.mxu0 0.0
        %767 = vmatpush1.msra.mxu0 0.0
        %768 = vmatprep.subr.mxu0 0.0
        %769 = vmatpush1.msra.mxu0 0.0
        %770 = vmatprep.subr.mxu0 0.0
        %771 = vmatpush1.msra.mxu0 0.0
        %772 = vmatprep.subr.mxu0 0.0
        %773 = vmatpush1.msra.mxu0 0.0
        %774 = vmatprep.subr.mxu0 0.0
        %775 = vmatpush1.msra.mxu0 0.0
        %776 = vmatprep.mubr.f32.mxu0 0.0
        %777 = vmatmul.mubr.f32.gmra.mrb[0].mxu0 %v616
        %v778 = vpop.f32.mrb[0].mxu0
        %v779 = vadd.f32 %v635, %v778
        %v780 = vpop.f32.mrb[0].mxu0
        %v781 = vadd.f32 %v635, %v780
        %782 = vmatprep.mubr.f32.mxu0 0.0
        %783 = vmatmul.mubr.f32.gmra.mrb[0].mxu0 %v617
        %v784 = vpop.f32.mrb[0].mxu0
        %v785 = vadd.f32 %v640, %v784
        %v786 = vpop.f32.mrb[0].mxu0
        %v787 = vadd.f32 %v640, %v786
        %788 = vmatprep.mubr.f32.mxu0 0.0
        %789 = vmatmul.mubr.f32.gmra.mrb[0].mxu0 %v618
        %v790 = vpop.f32.mrb[0].mxu0
        %v791 = vadd.f32 %v645, %v790
        %v792 = vpop.f32.mrb[0].mxu0
        %v793 = vadd.f32 %v645, %v792
        %794 = vmatprep.mubr.f32.mxu0 0.0
        %795 = vmatmul.mubr.f32.gmra.mrb[0].mxu0 %v619
        %v796 = vpop.f32.mrb[0].mxu0
        %v797 = vadd.f32 %v650, %v796
        %v798 = vpop.f32.mrb[0].mxu0
        %v799 = vadd.f32 %v650, %v798
        %800 = vmatprep.mubr.f32.mxu0 0.0
        %801 = vmatmul.mubr.f32.gmra.mrb[0].mxu0 %v620
        %v802 = vpop.f32.mrb[0].mxu0
        %v803 = vadd.f32 %v655, %v802
        %v804 = vpop.f32.mrb[0].mxu0
        %v805 = vadd.f32 %v655, %v804
        %806 = vmatprep.mubr.f32.mxu0 0.0
        %807 = vmatmul.mubr.f32.gmra.mrb[0].mxu0 %v621
        %v808 = vpop.f32.mrb[0].mxu0
        %v809 = vadd.f32 %v660, %v808
        %v810 = vpop.f32.mrb[0].mxu0
        %v811 = vadd.f32 %v660, %v810
        %812 = vmatprep.mubr.f32.mxu0 0.0
        %813 = vmatmul.mubr.f32.gmra.mrb[0].mxu0 %v622
        %v814 = vpop.f32.mrb[0].mxu0
        %v815 = vadd.f32 %v665, %v814
        %v816 = vpop.f32.mrb[0].mxu0
        %v817 = vadd.f32 %v665, %v816
        %818 = vmatprep.mubr.f32.mxu0 0.0
        %819 = vmatmul.mubr.f32.gmra.mrb[0].mxu0 %v623
        %v820 = vpop.f32.mrb[0].mxu0
        %v821 = vadd.f32 %v670, %v820
        %v822 = vpop.f32.mrb[0].mxu0
        %v823 = vadd.f32 %v670, %v822
        %824 = vmatprep.mubr.f32.mxu0 0.0
        %825 = vmatmul.mubr.f32.gmra.mrb[0].mxu0 %v624
        %v826 = vpop.f32.mrb[0].mxu0
        %v827 = vadd.f32 %v675, %v826
        %v828 = vpop.f32.mrb[0].mxu0
        %v829 = vadd.f32 %v675, %v828
        %830 = vmatprep.mubr.f32.mxu0 0.0
        %831 = vmatmul.mubr.f32.gmra.mrb[0].mxu0 %v625
        %v832 = vpop.f32.mrb[0].mxu0
        %v833 = vadd.f32 %v680, %v832
        %v834 = vpop.f32.mrb[0].mxu0
        %v835 = vadd.f32 %v680, %v834
        %836 = vmatprep.mubr.f32.mxu0 0.0
        %837 = vmatmul.mubr.f32.gmra.mrb[0].mxu0 %v626
        %v838 = vpop.f32.mrb[0].mxu0
        %v839 = vadd.f32 %v685, %v838
        %v840 = vpop.f32.mrb[0].mxu0
        %v841 = vadd.f32 %v685, %v840
        %842 = vmatprep.mubr.f32.mxu0 0.0
        %843 = vmatmul.mubr.f32.gmra.mrb[0].mxu0 %v627
        %v844 = vpop.f32.mrb[0].mxu0
        %v845 = vadd.f32 %v690, %v844
        %v846 = vpop.f32.mrb[0].mxu0
        %v847 = vadd.f32 %v690, %v846
        %848 = vmatprep.mubr.f32.mxu0 0.0
        %849 = vmatmul.mubr.f32.gmra.mrb[0].mxu0 %v628
        %v850 = vpop.f32.mrb[0].mxu0
        %v851 = vadd.f32 %v695, %v850
        %v852 = vpop.f32.mrb[0].mxu0
        %v853 = vadd.f32 %v695, %v852
        %854 = vmatprep.mubr.f32.mxu0 0.0
        %855 = vmatmul.mubr.f32.gmra.mrb[0].mxu0 %v629
        %v856 = vpop.f32.mrb[0].mxu0
        %v857 = vadd.f32 %v700, %v856
        %v858 = vpop.f32.mrb[0].mxu0
        %v859 = vadd.f32 %v700, %v858
        %860 = vmatprep.mubr.f32.mxu0 0.0
        %861 = vmatmul.mubr.f32.gmra.mrb[0].mxu0 %v630
        %v862 = vpop.f32.mrb[0].mxu0
        %v863 = vadd.f32 %v705, %v862
        %v864 = vpop.f32.mrb[0].mxu0
        %v865 = vadd.f32 %v705, %v864
        %866 = vmatprep.mubr.f32.mxu0 0.0
        %867 = vmatmul.mubr.f32.gmra.mrb[0].mxu0 %v631
        %v868 = vpop.f32.mrb[0].mxu0
        %v869 = vadd.f32 %v710, %v868
        %v870 = vpop.f32.mrb[0].mxu0
        %v871 = vadd.f32 %v710, %v870
        %872 = vdwg.mxu0
        %873 = vst [vmem:[%s260] sm:$0xff] %v779
        %874 = vst [vmem:[%s260 + $0x8] sm:$0xff] %v781
        %875 = vst [vmem:[%s260 + $0x10] sm:$0xff] %v785
        %876 = vst [vmem:[%s260 + $0x18] sm:$0xff] %v787
        %877 = vst [vmem:[%s260 + $0x20] sm:$0xff] %v791
        %878 = vst [vmem:[%s260 + $0x28] sm:$0xff] %v793
        %879 = vst [vmem:[%s260 + $0x30] sm:$0xff] %v797
        %880 = vst [vmem:[%s260 + $0x38] sm:$0xff] %v799
        %881 = vst [vmem:[%s260 + $0x40] sm:$0xff] %v803
        %882 = vst [vmem:[%s260 + $0x48] sm:$0xff] %v805
        %883 = vst [vmem:[%s260 + $0x50] sm:$0xff] %v809
        %884 = vst [vmem:[%s260 + $0x58] sm:$0xff] %v811
        %885 = vst [vmem:[%s260 + $0x60] sm:$0xff] %v815
        %886 = vst [vmem:[%s260 + $0x68] sm:$0xff] %v817
        %887 = vst [vmem:[%s260 + $0x70] sm:$0xff] %v821
        %888 = vst [vmem:[%s260 + $0x78] sm:$0xff] %v823
        %889 = vst [vmem:[%s260 + $0x80] sm:$0xff] %v827
        %890 = vst [vmem:[%s260 + $0x88] sm:$0xff] %v829
        %891 = vst [vmem:[%s260 + $0x90] sm:$0xff] %v833
        %892 = vst [vmem:[%s260 + $0x98] sm:$0xff] %v835
        %893 = vst [vmem:[%s260 + $0xa0] sm:$0xff] %v839
        %894 = vst [vmem:[%s260 + $0xa8] sm:$0xff] %v841
        %895 = vst [vmem:[%s260 + $0xb0] sm:$0xff] %v845
        %896 = vst [vmem:[%s260 + $0xb8] sm:$0xff] %v847
        %897 = vst [vmem:[%s260 + $0xc0] sm:$0xff] %v851
        %898 = vst [vmem:[%s260 + $0xc8] sm:$0xff] %v853
        %899 = vst [vmem:[%s260 + $0xd0] sm:$0xff] %v857
        %900 = vst [vmem:[%s260 + $0xd8] sm:$0xff] %v859
        %901 = vst [vmem:[%s260 + $0xe0] sm:$0xff] %v863
        %902 = vst [vmem:[%s260 + $0xe8] sm:$0xff] %v865
        %903 = vst [vmem:[%s260 + $0xf0] sm:$0xff] %v869
        %904 = vst [vmem:[%s260 + $0xf8] sm:$0xff] %v871
        %s905 = sand.u32 %s156, 1
        %s906 = scalar_lea.sflag [#allocation4], %s905
        %s907 = sand.u32 %s156, 1
        %s908 = smul.addr %s907, 256
        %s909 = scalar_lea.vmem [#allocation5], %s908
        // Predicated region
        $region45: #{tpu_custom_call.1} parent=39 // pred_check
          %p910 = pneg %p166
        $region46: #{tpu_custom_call.1} parent=39 // pred_check_branch
          %912 = sbr.rel (%p910) target = $region48
        $region47: #{tpu_custom_call.1} parent=39 // pred_region
          %s913 = smul.u32 2, %s27
          %s915 = ssub.s32 4096, 4096
          %916 = vsyncadd %s906, %s915
          %s917 = smul.addr %s26, 32
          %s918 = sadd.s32 %s913, %s917
          %s919 = smul.addr %s918, 128
          %s920 = scalar_lea.hbm %s5, %s919
          %s921 = sshll.u32 %s909, 4
          %s922 = int_to_ptr.vmem [resolvable:$true] %s921
          %927 = dma.vmem_to_hbm [thread:$0]  %s922, 4096, %s920, %s906, 256, 256, 16
        $region48: #{tpu_custom_call.1} parent=39 // pred_fallthru
          _
      $region40: #{tpu_custom_call.1} parent=5 // pred_fallthru
        _
      %p928 = scmp.le.s32.totalorder 2, %s17
      // Predicated region
      $region49: #{tpu_custom_call.1} parent=5 // pred_check
        %p929 = pneg %p928
      $region50: #{tpu_custom_call.1} parent=5 // pred_check_branch
        %931 = sbr.rel (%p929) target = $region52
      $region51: #{tpu_custom_call.1} parent=5 // pred_region
        %s932 = ssub.s32 %s17, 2
        // Predicated region
        $region53: #{tpu_custom_call.1} parent=51 // pred_check
          %p933 = pneg %p172
        $region54: #{tpu_custom_call.1} parent=51 // pred_check_branch
          %935 = sbr.rel (%p933) target = $region56
        $region55: #{tpu_custom_call.1} parent=51 // pred_region
          %s936 = sand.u32 %s157, 1
          %s937 = scalar_lea.sflag [#allocation4], %s936
          %s938 = sand.u32 %s157, 1
          %s939 = smul.addr %s938, 256
          %s940 = scalar_lea.vmem [#allocation5], %s939
          %941 = dma.done %s937, 4096
        $region56: #{tpu_custom_call.1} parent=51 // pred_fallthru
          _
      $region52: #{tpu_custom_call.1} parent=5 // pred_fallthru
        _
    $region6: #{tpu_custom_call.1} parent=1 // loop_footer
      %s21 = sadd.s32 1, %s17
    $region7: #{tpu_custom_call.1} parent=1 // loop_footer_branch
      %16 = sbr.rel target = $region3
    $region8: #{tpu_custom_call.1} parent=1 // loop_exit
      _
    %942 = vsyncpa [#allocation3], 1
    %s943 = scalar_lea.sflag [#allocation3], 1
    %944 = vsyncpa %s943, 1
    %945 = vsyncpa [#allocation4], 1
    %s946 = scalar_lea.sflag [#allocation4], 1
    %947 = vsyncpa %s946, 1

</llo_original>
